<compile_context>
chip_gen: v5e
topology: v5e:2x2
jax: 0.10.0
libtpu: 0.0.40
codegen_flags: <defaults>
</compile_context>

<pallas_src>
import math
import jax
import jax.numpy as jnp
from jax.experimental import pallas as pl
from jax.experimental.pallas import tpu as pltpu

TWO_PI = 2.0 * math.pi
NEG_FOUR_PI_SQ = -4.0 * (math.pi ** 2)

_VMEM_LIMIT_BYTES = 32 * 1024 * 1024        # scoped VMEM limit (safe on v5e/v6e/v7x)
_WORKING_SET_BUDGET = 24 * 1024 * 1024      # double-buffered in+out per grid step


def _pad8(x):
    return ((x + 7) // 8) * 8


def _pick_lane_tile(n, rows_in, rows_out, itemsize):
    """Largest multiple-of-128 divisor of n that fits the VMEM working-set budget.

    Prefers >= 2 lane-grid steps when the half-size tile is still large
    (>= 1024 lanes) so v7x's two TensorCores both get work.
    """
    if n % 128 != 0:
        return n  # full row (block dim == full array dim is always legal)
    bytes_per_lane = 2 * (_pad8(rows_in) + _pad8(rows_out)) * itemsize
    max_tn = max(128, (_WORKING_SET_BUDGET // bytes_per_lane) // 128 * 128)
    best = None
    best_split = None
    for tn in range(128, n + 1, 128):
        if n % tn == 0 and tn <= max_tn:
            best = tn
            if 2 * tn <= n:
                best_split = tn
    if best is None:
        return n  # unreachable: 128 always qualifies
    if best == n and best_split is not None and best_split >= 8 * 128:
        return best_split
    return best


def _make_group_product_kernel(ranges):
    """Kernel factory. `ranges` is a static tuple of (row_start, row_end) per group."""
    ng = len(ranges)

    def kernel(x_ref, o_ref):
        # One dense sin over the full (total_rows, TN) block: every vreg has all
        # 8 sublanes live, so EUP/VALU pushes are ~Gmax× fewer than per-row
        # slicing. No masking: only real group members were packed.
        s = jnp.sin(TWO_PI * x_ref[...])
        prods = []
        for (r0, r1) in ranges:
            p = s[r0:r0 + 1, :]
            for r in range(r0 + 1, r1):
                p = p * s[r:r + 1, :]          # tiny unrolled VALU multiply chain
            prods.append(p)
        # One lane-dense store of the whole (ng, TN) output block.
        o_ref[...] = prods[0] if ng == 1 else jnp.concatenate(prods, axis=0)

    return kernel


def _fused_group_products(packed, ranges):
    """packed: (total_rows, n) stacked columns; ranges: static per-group row spans.

    Returns (ng, n) — sin products per group.
    """
    total_rows, n = packed.shape
    ng = len(ranges)
    itemsize = jnp.dtype(packed.dtype).itemsize
    tn = _pick_lane_tile(n, total_rows, ng, itemsize)
    return pl.pallas_call(
        _make_group_product_kernel(ranges),
        out_shape=jax.ShapeDtypeStruct((ng, n), packed.dtype),
        grid=(n // tn,),
        in_specs=[pl.BlockSpec((total_rows, tn), lambda li: (0, li))],
        out_specs=pl.BlockSpec((ng, tn), lambda li: (0, li)),
        compiler_params=pltpu.CompilerParams(
            dimension_semantics=("parallel",),
            vmem_limit_bytes=_VMEM_LIMIT_BYTES),
    )(packed)


def poixd_homogen_tensor_sep(quad_x, param_a, quad_concat):
    """JAX/Pallas equivalent of PoiXd_homogen_tensor_sep.forward.

    quad_x:      list of (N_k, D) arrays (only column 0 is used)
    param_a:     arbitrary-shaped array (scalar multiply in torch)
    quad_concat: tuple of index tuples (the separable groups)
    """
    num_groups = len(quad_concat)
    results = [None] * num_groups

    # Bucket groups by (row count, promoted dtype) so each bucket is a single
    # fused launch (one launch total in the common all-equal case).
    buckets = {}
    for gi, idx in enumerate(quad_concat):
        n = int(quad_x[idx[0]].shape[0])
        dt = jnp.result_type(*(quad_x[k].dtype for k in idx))
        buckets.setdefault((n, dt), []).append(gi)

    for (n, dt), gids in buckets.items():
        # Static row layout: concatenate real members only — no padding rows.
        rows, ranges = [], []
        for gi in gids:
            idx = quad_concat[gi]
            r0 = len(rows)
            for k in idx:
                rows.append(quad_x[k][:, 0].astype(dt))
            ranges.append((r0, len(rows)))
        # NOTE: this pack is a pure layout transform over static structure; in a
        # steady-state loop it should be built once and cached across calls.
        packed = jnp.stack(rows, axis=0)                      # (total_rows, n)

        out = _fused_group_products(packed, tuple(ranges))    # (len(gids), n)
        for row, gi in enumerate(gids):
            results[gi] = out[row, :].reshape(n, 1)

    # Coefficient: plain XLA — a standalone Pallas launch for one scalar
    # multiply on a lane-sparse (N, 1) array is pure overhead.
    mult_coeff = NEG_FOUR_PI_SQ * param_a
    return results, mult_coeff


if __name__ == "__main__":
    key = jax.random.PRNGKey(0)

    # Small deterministic problem: 5 quadrature tensors of shape (N, D),
    # grouped as ((0, 1), (2, 3, 4), (1,)) — 2-D, 3-D and 1-D groups to
    # exercise the fused multi-group path (no padding rows anywhere).
    N, D = 256, 2
    quad_concat = ((0, 1), (2, 3, 4), (1,))
    n_tensors = 5

    keys = jax.random.split(key, n_tensors + 1)
    quad_x = [jax.random.uniform(keys[k], (N, D), dtype=jnp.float32)
              for k in range(n_tensors)]
    param_a = jax.random.normal(keys[-1], (N, 1), dtype=jnp.float32)

    list_sep_f, mult_coeff = poixd_homogen_tensor_sep(quad_x, param_a, quad_concat)
    list_sep_f = [jax.block_until_ready(a) for a in list_sep_f]
    mult_coeff = jax.block_until_ready(mult_coeff)

    # Pure-JAX reference check.
    ok = True
    for idx, got in zip(quad_concat, list_sep_f):
        ref = jnp.sin(TWO_PI * quad_x[idx[0]][:, 0])
        for j in idx[1:]:
            ref = ref * jnp.sin(TWO_PI * quad_x[j][:, 0])
        ref = ref.reshape(N, 1)
        ok &= bool(jnp.allclose(got, ref, atol=1e-5, rtol=1e-5))
        ok &= (got.shape == (N, 1))
    coeff_ref = NEG_FOUR_PI_SQ * param_a
    ok &= bool(jnp.allclose(mult_coeff, coeff_ref, atol=1e-5, rtol=1e-5))
    ok &= (mult_coeff.shape == param_a.shape)

    if ok:
        print("KERNEL_OK")
    else:
        raise SystemExit("mismatch vs reference")
</pallas_src>

<mosaic_0001>
module attributes {stable_mosaic.version = 11 : i64} {
  func.func @kernel(%arg0: i32, %arg1: memref<6x256xf32, #tpu.memory_space<vmem>>, %arg2: memref<3x256xf32, #tpu.memory_space<vmem>>) attributes {dimension_semantics = [#tpu.dimension_semantics<parallel>], iteration_bounds = array<i64: 1>, scalar_prefetch = 0 : i64, scratch_operands = 0 : i64, tpu.core_type = #tpu.core_type<tc>, window_params = [{transform_indices = @transform_0, window_bounds = array<i64: 6, 256>}, {transform_indices = @transform_1, window_bounds = array<i64: 3, 256>}]} {
    %c0 = arith.constant 0 : index
    %c0_0 = arith.constant 0 : index
    %0 = vector.load %arg1[%c0, %c0_0] : memref<6x256xf32, #tpu.memory_space<vmem>>, vector<6x256xf32>
    %cst = arith.constant 6.28318548 : f32
    %1 = vector.broadcast %cst : f32 to vector<6x256xf32>
    %2 = arith.mulf %1, %0 : vector<6x256xf32>
    %3 = math.sin %2 : vector<6x256xf32>
    %4 = vector.extract_strided_slice %3 {offsets = [0, 0], sizes = [1, 256], strides = [1, 1]} : vector<6x256xf32> to vector<1x256xf32>
    %5 = vector.extract_strided_slice %3 {offsets = [1, 0], sizes = [1, 256], strides = [1, 1]} : vector<6x256xf32> to vector<1x256xf32>
    %6 = arith.mulf %4, %5 : vector<1x256xf32>
    %7 = vector.extract_strided_slice %3 {offsets = [2, 0], sizes = [1, 256], strides = [1, 1]} : vector<6x256xf32> to vector<1x256xf32>
    %8 = vector.extract_strided_slice %3 {offsets = [3, 0], sizes = [1, 256], strides = [1, 1]} : vector<6x256xf32> to vector<1x256xf32>
    %9 = arith.mulf %7, %8 : vector<1x256xf32>
    %10 = vector.extract_strided_slice %3 {offsets = [4, 0], sizes = [1, 256], strides = [1, 1]} : vector<6x256xf32> to vector<1x256xf32>
    %11 = arith.mulf %9, %10 : vector<1x256xf32>
    %12 = vector.extract_strided_slice %3 {offsets = [5, 0], sizes = [1, 256], strides = [1, 1]} : vector<6x256xf32> to vector<1x256xf32>
    %13 = tpu.concatenate %6, %11, %12 in 0 : vector<1x256xf32>, vector<1x256xf32>, vector<1x256xf32> -> vector<3x256xf32>
    %c0_1 = arith.constant 0 : index
    %c0_2 = arith.constant 0 : index
    %14 = vector.load %arg2[%c0_1, %c0_2] : memref<3x256xf32, #tpu.memory_space<vmem>>, vector<3x256xf32>
    tpu.vector_store %arg2[%c0_1, %c0_2], %13 {strides = array<i32>} : memref<3x256xf32, #tpu.memory_space<vmem>>, vector<3x256xf32>,
    return
  }
  func.func @transform_0(%arg0: i32) -> (i32, i32) {
    %c0_i32 = arith.constant 0 : i32
    %c0_i32_0 = arith.constant 0 : i32
    return %c0_i32, %arg0 : i32, i32
  }
  func.func @transform_1(%arg0: i32) -> (i32, i32) {
    %c0_i32 = arith.constant 0 : i32
    %c0_i32_0 = arith.constant 0 : i32
    return %c0_i32, %arg0 : i32, i32
  }
}

</mosaic_0001>

<llo_original>
// kernel: tpu_custom_call.1
$region0: #{tpu_custom_call.1}
  #allocation0 [shape = 'u32[]', space=smem, size = 0x4, offset = 0x4, fixed_abs, tag = 'smem constant byte address 0x4 - core index']
  #allocation1 [shape = 'u32[72,128]{1,0:T(1,128)}', space=vmem, size = 0x9000, scoped, tag = 'internal scratch']
  %s0 = inlined_call_operand.hbm [shape: f32[6,256], index: 0, kind: input, shape index: {}]
  %s1 = inlined_call_operand.hbm [shape: f32[3,256], index: 1, kind: output, shape index: {}]
  %s2 = sld [smem:[#allocation0]]
  $region18: #{tpu_custom_call.1} parent=0
    _
  %s4 = ssub.s32 1, %s2
  %s5 = scalar_select 0, %s4, %s2
  $region1: #{tpu_custom_call.1} parent=0
    #allocation2 [shape = 'u8[8192]{0}', space=vmem, size = 0x2000, scoped, tag = 'input window, operand 0, single buffered']
    #allocation3 [shape = 's32[1]{0}', space=sflag, size = 0x4, scoped, tag = 'scoped memory for tpu_custom_call.1']
    #allocation4 [shape = 's32[1]{0}', space=sflag, size = 0x4, scoped, tag = 'scoped memory for tpu_custom_call.1']
    #allocation5 [shape = 'u8[4096]{0}', space=vmem, size = 0x1000, scoped, tag = 'output window, operand 0, single buffered']
    %6 = vsyncpa [#allocation3], 0
    %7 = vsyncpa [#allocation4], 0
    // Predicated region
    $region2: #{tpu_custom_call.1} parent=1 // pred_check
      _
    $region3: #{tpu_custom_call.1} parent=1 // pred_check_branch
      %9 = sbr.rel (0) target = $region5
    $region4: #{tpu_custom_call.1} parent=1 // pred_region
      %11 = vsyncadd [#allocation3], 0
      %s13 = sshll.u32 %s0, 4
      %s14 = int_to_ptr.hbm [resolvable:$true] %s13
      %s15 = sshll.u32 [#allocation2], 4
      %s16 = int_to_ptr.vmem [resolvable:$true] %s15
      %18 = dma.hbm_to_vmem [thread:$0]  %s14, 256, %s16, [#allocation3]
    $region5: #{tpu_custom_call.1} parent=1 // pred_fallthru
      _
    // Predicated region
    $region6: #{tpu_custom_call.1} parent=1 // pred_check
      _
    $region7: #{tpu_custom_call.1} parent=1 // pred_check_branch
      %20 = sbr.rel (0) target = $region9
    $region8: #{tpu_custom_call.1} parent=1 // pred_region
      %22 = dma.done [#allocation3], 256
    $region9: #{tpu_custom_call.1} parent=1 // pred_fallthru
      _
    %v23 = vld [vmem:[#allocation2] sm:$0x3f]
    %v24 = vld [vmem:[#allocation2 + $0x8] sm:$0x3f]
    %v25 = vmul.f32 %v23, 6.2831855
    %v26 = vmul.f32 %v24, 6.2831855
    %v27 = vand.u32 2147483647, %v25
    %vm28 = vcmp.le.f32.partialorder %v27, 0.7853982
    %vm29 = vcmp.lt.s32.totalorder %v25, 0
    %v30 = vand.u32 %v25, 2139095040
    %v31 = vshrl.u32 %v30, 23
    %v32 = vsub.s32 %v31, 127
    %v33 = vand.u32 2147483647, %v25
    %v34 = vand.u32 %v33, 8388607
    %v35 = vor.u32 %v34, 8388608
    %v36 = vsub.s32 0, %v35
    %v37 = vadd.s32 %v32, 1
    %vm38 = vcmp.gt.s32.totalorder %v37, 0
    %v39 = vsel %vm38, %v37, 0
    %v40 = vshrl.u32 %v39, 5
    %v41 = vand.u32 %v39, 31
    %v42 = vsub.s32 32, %v41
    %v43 = vshrl.u32 683565275, %v42
    %v44 = vshll.u32 683565275, %v41
    %v45 = vshrl.u32 2475754826, %v42
    %v46 = vor.u32 %v44, %v45
    %v47 = vshll.u32 2475754826, %v41
    %v48 = vshrl.u32 2131351028, %v42
    %v49 = vor.u32 %v47, %v48
    %v50 = vshll.u32 2131351028, %v41
    %v51 = vshrl.u32 2102212464, %v42
    %v52 = vor.u32 %v50, %v51
    %v53 = vshll.u32 2102212464, %v41
    %v54 = vshrl.u32 920167782, %v42
    %v55 = vor.u32 %v53, %v54
    %v56 = vshll.u32 920167782, %v41
    %v57 = vshrl.u32 1326507024, %v42
    %v58 = vor.u32 %v56, %v57
    %vm59 = vcmp.lt.s32.totalorder %v40, 1
    %vm60 = vcmp.lt.s32.totalorder %v40, 2
    %vm61 = vcmp.lt.s32.totalorder %v40, 3
    %vm62 = vcmp.lt.s32.totalorder %v40, 4
    %v63 = vsel %vm59, %v43, %v46
    %v64 = vsel %vm62, %v52, 2102212464
    %v65 = vsel %vm61, %v49, %v64
    %v66 = vsel %vm60, %v63, %v65
    %v67 = vsel %vm59, %v46, %v49
    %v68 = vsel %vm62, %v55, 920167782
    %v69 = vsel %vm61, %v52, %v68
    %v70 = vsel %vm60, %v67, %v69
    %v71 = vsel %vm59, %v49, %v52
    %v72 = vsel %vm62, %v58, 1326507024
    %v73 = vsel %vm61, %v55, %v72
    %v74 = vsel %vm60, %v71, %v73
    %v75 = vshll.u32 %v35, 8
    %v76 = vand.u32 %v75, 65535
    %v77 = vshrl.u32 %v75, 16
    %v78 = vand.u32 %v74, 65535
    %v79 = vshrl.u32 %v74, 16
    %v80 = vmul.u32 %v76, %v78
    %v81 = vmul.u32 %v76, %v79
    %v82 = vmul.u32 %v77, %v78
    %v83 = vmul.u32 %v77, %v79
    %v84 = vshll.u32 %v81, 16
    %v85 = vshrl.u32 %v81, 16
    %v86 = vshll.u32 %v82, 16
    %v87 = vshrl.u32 %v82, 16
    %vm88 = vc.u32 %v80, %v84
    %v89 = vsel %vm88, 1, 0
    %v90 = vadd.s32 %v80, %v84
    %v91 = vadd.s32 %v83, %v89
    %vm92 = vc.u32 %v90, %v86
    %v93 = vsel %vm92, 1, 0
    %v94 = vadd.s32 %v90, %v86
    %v95 = vadd.s32 %v91, %v93
    %v96 = vadd.s32 %v95, %v85
    %v97 = vadd.s32 %v96, %v87
    %v98 = vand.u32 %v75, 65535
    %v99 = vshrl.u32 %v75, 16
    %v100 = vand.u32 %v70, 65535
    %v101 = vshrl.u32 %v70, 16
    %v102 = vmul.u32 %v98, %v100
    %v103 = vmul.u32 %v98, %v101
    %v104 = vmul.u32 %v99, %v100
    %v105 = vmul.u32 %v99, %v101
    %v106 = vshll.u32 %v103, 16
    %v107 = vshrl.u32 %v103, 16
    %v108 = vshll.u32 %v104, 16
    %v109 = vshrl.u32 %v104, 16
    %vm110 = vc.u32 %v102, %v106
    %v111 = vsel %vm110, 1, 0
    %v112 = vadd.s32 %v102, %v106
    %v113 = vadd.s32 %v105, %v111
    %vm114 = vc.u32 %v112, %v108
    %v115 = vsel %vm114, 1, 0
    %v116 = vadd.s32 %v112, %v108
    %v117 = vadd.s32 %v113, %v115
    %v118 = vadd.s32 %v117, %v107
    %v119 = vadd.s32 %v118, %v109
    %v120 = vmul.u32 %v75, %v66
    %v121 = vadd.s32 %v97, %v116
    %vm122 = vc.u32 %v97, %v116
    %v123 = vadd.s32 %v119, 1
    %v124 = vsel %vm122, %v123, %v119
    %v125 = vadd.s32 %v120, %v124
    %v126 = vadd.s32 %v125, 536870912
    %v127 = vshrl.u32 %v126, 30
    %v128 = vshll.u32 %v127, 30
    %v129 = vsub.s32 %v125, %v128
    %vm130 = vcmp.lt.s32.totalorder %v129, 0
    %v131 = vsub.s32 0, %v129
    %v132 = vsel %vm130, %v131, %v129
    %v133 = vclz %v132
    %v134 = vsub.s32 %v133, 2
    %vm135 = vcmp.gt.s32.totalorder 0, %v134
    %v136 = vsel %vm135, 0, %v134
    %v137 = vsub.s32 32, %v136
    %v138 = vshll.u32 %v129, %v136
    %v139 = vshrl.u32 %v121, %v137
    %v140 = vor.u32 %v138, %v139
    %v141 = vsub.s32 4294967266, %v136
    %v142 = vadd.s32 %v141, 127
    %v143 = vshll.u32 %v142, 23
    %v144 = vor.u32 4788187, %v143
    %v145 = vand.u32 2147483647, %v144
    %v147 = vcvt.s32.f32 %v140
    %v148 = vmul.f32 %v147, %v145
    %v149 = vxor.u32 %v148, 2147483648
    %v150 = vsel %vm29, %v149, %v148
    %v151 = vsub.s32 4, %v127
    %v152 = vsel %vm29, %v151, %v127
    %v153 = vsel %vm28, %v25, %v150
    %v154 = vsel %vm28, 0, %v152
    %v155 = vmul.f32 %v153, %v153
    %v156 = vmul.f32 %v155, -0.001358992
    %v157 = vadd.f32 %v156, 0.041655596
    %v158 = vmul.f32 %v155, %v157
    %v159 = vadd.f32 %v158, -0.4999988
    %v160 = vmul.f32 %v155, %v159
    %v161 = vadd.f32 1.0, %v160
    %v162 = vmul.f32 %v153, %v153
    %v163 = vmul.f32 %v162, -0.00019511016
    %v164 = vadd.f32 %v163, 0.008332121
    %v165 = vmul.f32 %v162, %v164
    %v166 = vadd.f32 %v165, -0.16666654
    %v167 = vmul.f32 %v162, %v166
    %v168 = vadd.f32 %v167, 1.0
    %v169 = vmul.f32 %v168, %v153
    %vm170 = vweird.f32 %v25
    %v171 = vadd.s32 %v154, 3
    %v172 = vand.u32 %v171, 3
    %vm173 = vcmp.lt.s32.totalorder %v172, 2
    %vm174 = vcmp.eq.s32.totalorder %v172, 0
    %v175 = vxor.u32 %v169, 2147483648
    %v176 = vsel %vm174, %v161, %v175
    %vm177 = vcmp.eq.s32.totalorder %v172, 2
    %v178 = vxor.u32 %v161, 2147483648
    %v179 = vsel %vm177, %v178, %v169
    %v180 = vsel %vm173, %v176, %v179
    %v181 = vsel %vm170, nan, %v180
    %v182 = vand.u32 2147483647, %v26
    %vm183 = vcmp.le.f32.partialorder %v182, 0.7853982
    %vm184 = vcmp.lt.s32.totalorder %v26, 0
    %v185 = vand.u32 %v26, 2139095040
    %v186 = vshrl.u32 %v185, 23
    %v187 = vsub.s32 %v186, 127
    %v188 = vand.u32 2147483647, %v26
    %v189 = vand.u32 %v188, 8388607
    %v190 = vor.u32 %v189, 8388608
    %v191 = vsub.s32 0, %v190
    %v192 = vadd.s32 %v187, 1
    %vm193 = vcmp.gt.s32.totalorder %v192, 0
    %v194 = vsel %vm193, %v192, 0
    %v195 = vshrl.u32 %v194, 5
    %v196 = vand.u32 %v194, 31
    %v197 = vsub.s32 32, %v196
    %v198 = vshrl.u32 683565275, %v197
    %v199 = vshll.u32 683565275, %v196
    %v200 = vshrl.u32 2475754826, %v197
    %v201 = vor.u32 %v199, %v200
    %v202 = vshll.u32 2475754826, %v196
    %v203 = vshrl.u32 2131351028, %v197
    %v204 = vor.u32 %v202, %v203
    %v205 = vshll.u32 2131351028, %v196
    %v206 = vshrl.u32 2102212464, %v197
    %v207 = vor.u32 %v205, %v206
    %v208 = vshll.u32 2102212464, %v196
    %v209 = vshrl.u32 920167782, %v197
    %v210 = vor.u32 %v208, %v209
    %v211 = vshll.u32 920167782, %v196
    %v212 = vshrl.u32 1326507024, %v197
    %v213 = vor.u32 %v211, %v212
    %vm214 = vcmp.lt.s32.totalorder %v195, 1
    %vm215 = vcmp.lt.s32.totalorder %v195, 2
    %vm216 = vcmp.lt.s32.totalorder %v195, 3
    %vm217 = vcmp.lt.s32.totalorder %v195, 4
    %v218 = vsel %vm214, %v198, %v201
    %v219 = vsel %vm217, %v207, 2102212464
    %v220 = vsel %vm216, %v204, %v219
    %v221 = vsel %vm215, %v218, %v220
    %v222 = vsel %vm214, %v201, %v204
    %v223 = vsel %vm217, %v210, 920167782
    %v224 = vsel %vm216, %v207, %v223
    %v225 = vsel %vm215, %v222, %v224
    %v226 = vsel %vm214, %v204, %v207
    %v227 = vsel %vm217, %v213, 1326507024
    %v228 = vsel %vm216, %v210, %v227
    %v229 = vsel %vm215, %v226, %v228
    %v230 = vshll.u32 %v190, 8
    %v231 = vand.u32 %v230, 65535
    %v232 = vshrl.u32 %v230, 16
    %v233 = vand.u32 %v229, 65535
    %v234 = vshrl.u32 %v229, 16
    %v235 = vmul.u32 %v231, %v233
    %v236 = vmul.u32 %v231, %v234
    %v237 = vmul.u32 %v232, %v233
    %v238 = vmul.u32 %v232, %v234
    %v239 = vshll.u32 %v236, 16
    %v240 = vshrl.u32 %v236, 16
    %v241 = vshll.u32 %v237, 16
    %v242 = vshrl.u32 %v237, 16
    %vm243 = vc.u32 %v235, %v239
    %v244 = vsel %vm243, 1, 0
    %v245 = vadd.s32 %v235, %v239
    %v246 = vadd.s32 %v238, %v244
    %vm247 = vc.u32 %v245, %v241
    %v248 = vsel %vm247, 1, 0
    %v249 = vadd.s32 %v245, %v241
    %v250 = vadd.s32 %v246, %v248
    %v251 = vadd.s32 %v250, %v240
    %v252 = vadd.s32 %v251, %v242
    %v253 = vand.u32 %v230, 65535
    %v254 = vshrl.u32 %v230, 16
    %v255 = vand.u32 %v225, 65535
    %v256 = vshrl.u32 %v225, 16
    %v257 = vmul.u32 %v253, %v255
    %v258 = vmul.u32 %v253, %v256
    %v259 = vmul.u32 %v254, %v255
    %v260 = vmul.u32 %v254, %v256
    %v261 = vshll.u32 %v258, 16
    %v262 = vshrl.u32 %v258, 16
    %v263 = vshll.u32 %v259, 16
    %v264 = vshrl.u32 %v259, 16
    %vm265 = vc.u32 %v257, %v261
    %v266 = vsel %vm265, 1, 0
    %v267 = vadd.s32 %v257, %v261
    %v268 = vadd.s32 %v260, %v266
    %vm269 = vc.u32 %v267, %v263
    %v270 = vsel %vm269, 1, 0
    %v271 = vadd.s32 %v267, %v263
    %v272 = vadd.s32 %v268, %v270
    %v273 = vadd.s32 %v272, %v262
    %v274 = vadd.s32 %v273, %v264
    %v275 = vmul.u32 %v230, %v221
    %v276 = vadd.s32 %v252, %v271
    %vm277 = vc.u32 %v252, %v271
    %v278 = vadd.s32 %v274, 1
    %v279 = vsel %vm277, %v278, %v274
    %v280 = vadd.s32 %v275, %v279
    %v281 = vadd.s32 %v280, 536870912
    %v282 = vshrl.u32 %v281, 30
    %v283 = vshll.u32 %v282, 30
    %v284 = vsub.s32 %v280, %v283
    %vm285 = vcmp.lt.s32.totalorder %v284, 0
    %v286 = vsub.s32 0, %v284
    %v287 = vsel %vm285, %v286, %v284
    %v288 = vclz %v287
    %v289 = vsub.s32 %v288, 2
    %vm290 = vcmp.gt.s32.totalorder 0, %v289
    %v291 = vsel %vm290, 0, %v289
    %v292 = vsub.s32 32, %v291
    %v293 = vshll.u32 %v284, %v291
    %v294 = vshrl.u32 %v276, %v292
    %v295 = vor.u32 %v293, %v294
    %v296 = vsub.s32 4294967266, %v291
    %v297 = vadd.s32 %v296, 127
    %v298 = vshll.u32 %v297, 23
    %v299 = vor.u32 4788187, %v298
    %v300 = vand.u32 2147483647, %v299
    %v302 = vcvt.s32.f32 %v295
    %v303 = vmul.f32 %v302, %v300
    %v304 = vxor.u32 %v303, 2147483648
    %v305 = vsel %vm184, %v304, %v303
    %v306 = vsub.s32 4, %v282
    %v307 = vsel %vm184, %v306, %v282
    %v308 = vsel %vm183, %v26, %v305
    %v309 = vsel %vm183, 0, %v307
    %v310 = vmul.f32 %v308, %v308
    %v311 = vmul.f32 %v310, -0.001358992
    %v312 = vadd.f32 %v311, 0.041655596
    %v313 = vmul.f32 %v310, %v312
    %v314 = vadd.f32 %v313, -0.4999988
    %v315 = vmul.f32 %v310, %v314
    %v316 = vadd.f32 1.0, %v315
    %v317 = vmul.f32 %v308, %v308
    %v318 = vmul.f32 %v317, -0.00019511016
    %v319 = vadd.f32 %v318, 0.008332121
    %v320 = vmul.f32 %v317, %v319
    %v321 = vadd.f32 %v320, -0.16666654
    %v322 = vmul.f32 %v317, %v321
    %v323 = vadd.f32 %v322, 1.0
    %v324 = vmul.f32 %v323, %v308
    %vm325 = vweird.f32 %v26
    %v326 = vadd.s32 %v309, 3
    %v327 = vand.u32 %v326, 3
    %vm328 = vcmp.lt.s32.totalorder %v327, 2
    %vm329 = vcmp.eq.s32.totalorder %v327, 0
    %v330 = vxor.u32 %v324, 2147483648
    %v331 = vsel %vm329, %v316, %v330
    %vm332 = vcmp.eq.s32.totalorder %v327, 2
    %v333 = vxor.u32 %v316, 2147483648
    %v334 = vsel %vm332, %v333, %v324
    %v335 = vsel %vm328, %v331, %v334
    %v336 = vsel %vm325, nan, %v335
    %v339 = vrot.slane %v181, 1
    %v340 = vrot.slane %v336, 1
    %v343 = vmul.f32 %v181, %v339
    %v344 = vmul.f32 %v336, %v340
    %v345 = vrot.slane %v181, 2
    %v346 = vrot.slane %v336, 2
    %v349 = vmul.f32 %v343, %v345
    %v350 = vmul.f32 %v344, %v346
    %v353 = vrot.slane %v349, 1
    %v354 = vrot.slane %v350, 1
    %v357 = vrot.slane %v181, 3
    %v358 = vrot.slane %v336, 3
    %vm361 = vcmask 1040384
    %v362 = vsel %vm361, %v343, %v353
    %v363 = vsel %vm361, %v344, %v354
    %vm364 = vcmask 1041408
    %v365 = vsel %vm364, %v362, %v357
    %v366 = vsel %vm364, %v363, %v358
    %v369 = vrot.slane %v366, 4
    %vm370 = vcmask 1043456
    %v371 = vsel %vm370, %v365, %v369
    %373 = vst [vmem:[#allocation5] sm:$0x77] %v371
    // Predicated region
    $region10: #{tpu_custom_call.1} parent=1 // pred_check
      _
    $region11: #{tpu_custom_call.1} parent=1 // pred_check_branch
      %375 = sbr.rel (0) target = $region13
    $region12: #{tpu_custom_call.1} parent=1 // pred_region
      %377 = vsyncadd [#allocation4], 0
      %s379 = sshll.u32 [#allocation5], 4
      %s380 = int_to_ptr.vmem [resolvable:$true] %s379
      %s381 = sshll.u32 %s1, 4
      %s382 = int_to_ptr.hbm [resolvable:$true] %s381
      %384 = dma.vmem_to_hbm [thread:$0]  %s380, 128, %s382, [#allocation4]
    $region13: #{tpu_custom_call.1} parent=1 // pred_fallthru
      _
    // Predicated region
    $region14: #{tpu_custom_call.1} parent=1 // pred_check
      _
    $region15: #{tpu_custom_call.1} parent=1 // pred_check_branch
      %386 = sbr.rel (0) target = $region17
    $region16: #{tpu_custom_call.1} parent=1 // pred_region
      %388 = dma.done [#allocation4], 128
    $region17: #{tpu_custom_call.1} parent=1 // pred_fallthru
      _
    %389 = vsyncpa [#allocation3], 1
    %390 = vsyncpa [#allocation4], 1

</llo_original>
